<compile_context>
chip_gen: v7x
topology: tpu7x:2x2x1
jax: 0.10.0
libtpu: 0.0.40
codegen_flags: <defaults>
</compile_context>

<pallas_src>
import jax
import jax.numpy as jnp
from jax.experimental import pallas as pl
from jax.experimental.pallas import tpu as pltpu


def critic_kernel(x_ref, w1_ref, b1_ref, w2_ref, b2_ref, w3_ref, b3_ref, o_ref):
    # bf16 MXU matmuls with f32 accumulation; all elementwise math in f32.
    x = x_ref[...].astype(jnp.bfloat16)
    h1 = jnp.dot(x, w1_ref[...], preferred_element_type=jnp.float32) + b1_ref[...]
    h1 = jnp.maximum(h1, 0.0)
    h2 = jnp.dot(h1.astype(jnp.bfloat16), w2_ref[...],
                 preferred_element_type=jnp.float32) + b2_ref[...]
    h2 = jnp.maximum(h2, 0.0)
    # Final layer (hidden -> 1): VPU multiply + lane reduction -> (TB, 1).
    o_ref[...] = jnp.sum(h2 * w3_ref[...], axis=-1, keepdims=True) + b3_ref[...]


def _round_up(n, m):
    return ((n + m - 1) // m) * m


def _pick_batch_tile(batch):
    if batch <= 256:
        # One snug tile, aligned to the 8-row sublane granularity.
        return max(8, _round_up(batch, 8))
    # >= 2 tiles (feeds both TensorCores on v7x), multiple of 256 MXU rows,
    # capped so double-buffered tiles + intermediates stay well under VMEM
    # limits on every generation (v5e/v6e/v7x).
    return min(2048, _round_up(pl.cdiv(batch, 2), 256))


def critic_forward(x, w1, b1, w2, b2, w3, b3, *, tb=None):
    """Fused Critic forward. x: (B, in_dims) f32. Returns (B, out_dims) f32."""
    B, in_dims = x.shape
    hidden = w1.shape[1]
    out_dims = w3.shape[1]
    assert out_dims == 1, "Critic output layer is 1-wide"

    if tb is None:
        tb = _pick_batch_tile(B)
    num_tiles = pl.cdiv(B, tb)
    b_pad = num_tiles * tb

    # MXU operands in bf16 (tiny weights, negligible cast cost). x stays f32 in
    # HBM and is cast per tile in-kernel to avoid an extra host-side HBM pass.
    w1_bf = w1.astype(jnp.bfloat16)
    w2_bf = w2.astype(jnp.bfloat16)
    # Last-layer weight as a (1, hidden) f32 row for the VPU reduction.
    w3_row = w3.T

    flops = 2 * b_pad * (in_dims * hidden + hidden * hidden + hidden * out_dims)
    bytes_accessed = (
        4 * B * in_dims                                  # x in (f32)
        + 4 * b_pad * out_dims                           # out (f32)
        + 2 * (in_dims * hidden + hidden * hidden)       # w1, w2 (bf16)
        + 4 * (hidden * out_dims + 2 * hidden + out_dims)  # w3 + biases (f32)
    )

    out = pl.pallas_call(
        critic_kernel,
        out_shape=jax.ShapeDtypeStruct((b_pad, out_dims), jnp.float32),
        grid_spec=pltpu.PrefetchScalarGridSpec(
            num_scalar_prefetch=0,
            grid=(num_tiles,),
            in_specs=[
                pl.BlockSpec((tb, in_dims), lambda i: (i, 0)),      # x: batch-tiled
                pl.BlockSpec((in_dims, hidden), lambda i: (0, 0)),  # w1 (resident)
                pl.BlockSpec((1, hidden), lambda i: (0, 0)),        # b1
                pl.BlockSpec((hidden, hidden), lambda i: (0, 0)),   # w2
                pl.BlockSpec((1, hidden), lambda i: (0, 0)),        # b2
                pl.BlockSpec((1, hidden), lambda i: (0, 0)),        # w3 row
                pl.BlockSpec((1, 1), lambda i: (0, 0)),             # b3
            ],
            out_specs=pl.BlockSpec((tb, out_dims), lambda i: (i, 0)),
        ),
        compiler_params=pltpu.CompilerParams(
            dimension_semantics=("parallel",),
            vmem_limit_bytes=32 * 1024 * 1024,
        ),
        cost_estimate=pl.CostEstimate(
            flops=flops, transcendentals=0, bytes_accessed=bytes_accessed
        ),
    )(x, w1_bf, b1, w2_bf, b2, w3_row, b3)
    return out[:B]


def init_linear_params(key, fan_in, fan_out):
    # Mirrors PyTorch nn.Linear default init: U(-1/sqrt(fan_in), 1/sqrt(fan_in)).
    kw, kb = jax.random.split(key)
    bound = 1.0 / jnp.sqrt(jnp.float32(fan_in))
    w = jax.random.uniform(kw, (fan_in, fan_out), jnp.float32, -bound, bound)
    b = jax.random.uniform(kb, (1, fan_out), jnp.float32, -bound, bound)
    return w, b


if __name__ == "__main__":
    input_dims, hidden, output_dims = 10, 128, 1
    batch = 8

    key = jax.random.PRNGKey(0)
    kx, k1, k2, k3 = jax.random.split(key, 4)

    x = jax.random.normal(kx, (batch, input_dims), jnp.float32)
    w1, b1 = init_linear_params(k1, input_dims, hidden)
    w2, b2 = init_linear_params(k2, hidden, hidden)
    w3, b3 = init_linear_params(k3, hidden, output_dims)

    out = critic_forward(x, w1, b1, w2, b2, w3, b3)
    jax.block_until_ready(out)

    # Reference in plain f32 JAX (same math as the PyTorch forward). The kernel's
    # MXU operands are bf16 (f32 accumulation), so tolerances are relaxed.
    ref = jnp.maximum(x @ w1 + b1, 0.0)
    ref = jnp.maximum(ref @ w2 + b2, 0.0)
    ref = ref @ w3 + b3
    assert out.shape == (batch, output_dims)
    assert jnp.allclose(out, ref, atol=2e-2, rtol=2e-2)

    print("KERNEL_OK")
</pallas_src>

<mosaic_0001>
module attributes {stable_mosaic.version = 11 : i64} {
  func.func @critic_kernel(%arg0: i32, %arg1: memref<8x10xf32, #tpu.memory_space<vmem>>, %arg2: memref<10x128xbf16, #tpu.memory_space<vmem>>, %arg3: memref<1x128xf32, #tpu.memory_space<vmem>>, %arg4: memref<128x128xbf16, #tpu.memory_space<vmem>>, %arg5: memref<1x128xf32, #tpu.memory_space<vmem>>, %arg6: memref<1x128xf32, #tpu.memory_space<vmem>>, %arg7: memref<1x1xf32, #tpu.memory_space<vmem>>, %arg8: memref<8x1xf32, #tpu.memory_space<vmem>>) attributes {dimension_semantics = [#tpu.dimension_semantics<parallel>], iteration_bounds = array<i64: 1>, scalar_prefetch = 0 : i64, scratch_operands = 0 : i64, tpu.core_type = #tpu.core_type<tc>, window_params = [{transform_indices = @transform_0, window_bounds = array<i64: 8, 10>}, {pipeline_mode = #tpu.pipeline_mode<synchronous>, transform_indices = @transform_1, window_bounds = array<i64: 10, 128>}, {pipeline_mode = #tpu.pipeline_mode<synchronous>, transform_indices = @transform_2, window_bounds = array<i64: 1, 128>}, {pipeline_mode = #tpu.pipeline_mode<synchronous>, transform_indices = @transform_3, window_bounds = array<i64: 128, 128>}, {pipeline_mode = #tpu.pipeline_mode<synchronous>, transform_indices = @transform_4, window_bounds = array<i64: 1, 128>}, {pipeline_mode = #tpu.pipeline_mode<synchronous>, transform_indices = @transform_5, window_bounds = array<i64: 1, 128>}, {pipeline_mode = #tpu.pipeline_mode<synchronous>, transform_indices = @transform_6, window_bounds = array<i64: 1, 1>}, {transform_indices = @transform_7, window_bounds = array<i64: 8, 1>}]} {
    %c0 = arith.constant 0 : index
    %c0_0 = arith.constant 0 : index
    %0 = vector.load %arg1[%c0, %c0_0] : memref<8x10xf32, #tpu.memory_space<vmem>>, vector<8x10xf32>
    %1 = arith.truncf %0 : vector<8x10xf32> to vector<8x10xbf16>
    %c0_1 = arith.constant 0 : index
    %c0_2 = arith.constant 0 : index
    %2 = vector.load %arg2[%c0_1, %c0_2] : memref<10x128xbf16, #tpu.memory_space<vmem>>, vector<10x128xbf16>
    %cst = arith.constant dense<0.000000e+00> : vector<8x128xf32>
    %3 = tpu.matmul %1, %2, %cst {dimension_numbers = #tpu.dot_dimension_numbers<[1], [0], [0], [1], [0, 0, 1, 1], [], []>} : vector<8x10xbf16>, vector<10x128xbf16>, vector<8x128xf32> -> vector<8x128xf32>
    %c0_3 = arith.constant 0 : index
    %c0_4 = arith.constant 0 : index
    %4 = vector.load %arg3[%c0_3, %c0_4] : memref<1x128xf32, #tpu.memory_space<vmem>>, vector<1x128xf32>
    %5 = vector.broadcast %4 : vector<1x128xf32> to vector<8x128xf32>
    %6 = arith.addf %3, %5 : vector<8x128xf32>
    %cst_5 = arith.constant 0.000000e+00 : f32
    %7 = vector.broadcast %cst_5 : f32 to vector<8x128xf32>
    %8 = arith.maximumf %6, %7 : vector<8x128xf32>
    %9 = arith.truncf %8 : vector<8x128xf32> to vector<8x128xbf16>
    %c0_6 = arith.constant 0 : index
    %c0_7 = arith.constant 0 : index
    %10 = vector.load %arg4[%c0_6, %c0_7] : memref<128x128xbf16, #tpu.memory_space<vmem>>, vector<128x128xbf16>
    %cst_8 = arith.constant dense<0.000000e+00> : vector<8x128xf32>
    %11 = tpu.matmul %9, %10, %cst_8 {dimension_numbers = #tpu.dot_dimension_numbers<[1], [0], [0], [1], [0, 0, 1, 1], [], []>} : vector<8x128xbf16>, vector<128x128xbf16>, vector<8x128xf32> -> vector<8x128xf32>
    %c0_9 = arith.constant 0 : index
    %c0_10 = arith.constant 0 : index
    %12 = vector.load %arg5[%c0_9, %c0_10] : memref<1x128xf32, #tpu.memory_space<vmem>>, vector<1x128xf32>
    %13 = vector.broadcast %12 : vector<1x128xf32> to vector<8x128xf32>
    %14 = arith.addf %11, %13 : vector<8x128xf32>
    %cst_11 = arith.constant 0.000000e+00 : f32
    %15 = vector.broadcast %cst_11 : f32 to vector<8x128xf32>
    %16 = arith.maximumf %14, %15 : vector<8x128xf32>
    %c0_12 = arith.constant 0 : index
    %c0_13 = arith.constant 0 : index
    %17 = vector.load %arg6[%c0_12, %c0_13] : memref<1x128xf32, #tpu.memory_space<vmem>>, vector<1x128xf32>
    %18 = vector.broadcast %17 : vector<1x128xf32> to vector<8x128xf32>
    %19 = arith.mulf %16, %18 : vector<8x128xf32>
    %cst_14 = arith.constant dense<0.000000e+00> : vector<8xf32>
    %20 = vector.multi_reduction <add>, %19, %cst_14 [1] : vector<8x128xf32> to vector<8xf32>
    %21 = vector.shape_cast %20 : vector<8xf32> to vector<8x1xf32>
    %c0_15 = arith.constant 0 : index
    %c0_16 = arith.constant 0 : index
    %22 = vector.load %arg7[%c0_15, %c0_16] : memref<1x1xf32, #tpu.memory_space<vmem>>, vector<1x1xf32>
    %23 = vector.broadcast %22 : vector<1x1xf32> to vector<8x1xf32>
    %24 = arith.addf %21, %23 : vector<8x1xf32>
    %c0_17 = arith.constant 0 : index
    %c0_18 = arith.constant 0 : index
    %25 = vector.load %arg8[%c0_17, %c0_18] : memref<8x1xf32, #tpu.memory_space<vmem>>, vector<8x1xf32>
    tpu.vector_store %arg8[%c0_17, %c0_18], %24 {strides = array<i32>} : memref<8x1xf32, #tpu.memory_space<vmem>>, vector<8x1xf32>,
    return
  }
  func.func @transform_0(%arg0: i32) -> (i32, i32) {
    %c0_i32 = arith.constant 0 : i32
    %c0_i32_0 = arith.constant 0 : i32
    return %arg0, %c0_i32 : i32, i32
  }
  func.func @transform_1(%arg0: i32) -> (i32, i32) {
    %c0_i32 = arith.constant 0 : i32
    %c0_i32_0 = arith.constant 0 : i32
    %c0_i32_1 = arith.constant 0 : i32
    return %c0_i32, %c0_i32_0 : i32, i32
  }
  func.func @transform_2(%arg0: i32) -> (i32, i32) {
    %c0_i32 = arith.constant 0 : i32
    %c0_i32_0 = arith.constant 0 : i32
    %c0_i32_1 = arith.constant 0 : i32
    return %c0_i32, %c0_i32_0 : i32, i32
  }
  func.func @transform_3(%arg0: i32) -> (i32, i32) {
    %c0_i32 = arith.constant 0 : i32
    %c0_i32_0 = arith.constant 0 : i32
    %c0_i32_1 = arith.constant 0 : i32
    return %c0_i32, %c0_i32_0 : i32, i32
  }
  func.func @transform_4(%arg0: i32) -> (i32, i32) {
    %c0_i32 = arith.constant 0 : i32
    %c0_i32_0 = arith.constant 0 : i32
    %c0_i32_1 = arith.constant 0 : i32
    return %c0_i32, %c0_i32_0 : i32, i32
  }
  func.func @transform_5(%arg0: i32) -> (i32, i32) {
    %c0_i32 = arith.constant 0 : i32
    %c0_i32_0 = arith.constant 0 : i32
    %c0_i32_1 = arith.constant 0 : i32
    return %c0_i32, %c0_i32_0 : i32, i32
  }
  func.func @transform_6(%arg0: i32) -> (i32, i32) {
    %c0_i32 = arith.constant 0 : i32
    %c0_i32_0 = arith.constant 0 : i32
    %c0_i32_1 = arith.constant 0 : i32
    return %c0_i32, %c0_i32_0 : i32, i32
  }
  func.func @transform_7(%arg0: i32) -> (i32, i32) {
    %c0_i32 = arith.constant 0 : i32
    %c0_i32_0 = arith.constant 0 : i32
    return %arg0, %c0_i32 : i32, i32
  }
}

</mosaic_0001>

<llo_original>
// kernel: tpu_custom_call.1
$region0: #{tpu_custom_call.1}
  #allocation0 [shape = 'u32[]', space=smem, size = 0x4, offset = 0x4, fixed_abs, tag = 'smem constant byte address 0x4 - core index']
  #allocation1 [shape = 'u32[144,128]{1,0:T(1,128)}', space=vmem, size = 0x12000, scoped, tag = 'internal scratch']
  #allocation2 [shape = 'f32[1,1]{1,0:T(1,128)S(1)}', space=vmem, size = 0x200, scoped, tag = 'scoped memory for tpu_custom_call.1']
  %s0 = inlined_call_operand.hbm [shape: f32[8,10], index: 0, kind: input, shape index: {}]
  %s1 = inlined_call_operand.hbm [shape: bf16[10,128], index: 1, kind: input, shape index: {}]
  %s2 = inlined_call_operand.vmem [shape: f32[1,128], index: 2, kind: input, shape index: {}]
  %s3 = inlined_call_operand.hbm [shape: bf16[128,128], index: 3, kind: input, shape index: {}]
  %s4 = inlined_call_operand.vmem [shape: f32[1,128], index: 4, kind: input, shape index: {}]
  %s5 = inlined_call_operand.vmem [shape: f32[1,128], index: 5, kind: input, shape index: {}]
  %s6 = inlined_call_operand.<no memory space> [shape: f32[1,1], index: 6, kind: input, shape index: {}]
  %s7 = inlined_call_operand.vmem [shape: f32[8,1], index: 7, kind: output, shape index: {}]
  %s8 = sld [smem:[#allocation0]]
  $region50: #{tpu_custom_call.1} parent=0
    _
  %s10 = ssub.s32 1, %s8
  %s11 = scalar_select 0, %s10, %s8
  %v12 = vstv %s6
  %13 = vst [vmem:[#allocation2] sm:$0x1] %v12
  $region1: #{tpu_custom_call.1} parent=0
    #allocation3 [shape = 'u8[4096]{0}', space=vmem, size = 0x1000, scoped, tag = 'input window, operand 0, single buffered']
    #allocation4 [shape = 's32[1]{0}', space=sflag, size = 0x4, scoped, tag = 'scoped memory for tpu_custom_call.1']
    #allocation5 [shape = 'u8[4096]{0}', space=vmem, size = 0x1000, scoped, tag = 'input window, operand 1, single buffered']
    #allocation6 [shape = 's32[1]{0}', space=sflag, size = 0x4, scoped, tag = 'scoped memory for tpu_custom_call.1']
    #allocation7 [shape = 'u8[32768]{0}', space=vmem, size = 0x8000, scoped, tag = 'input window, operand 3, single buffered']
    %14 = vsyncpa [#allocation4], 0
    %15 = vsyncpa [#allocation6], 0
    // Predicated region
    $region2: #{tpu_custom_call.1} parent=1 // pred_check
      _
    $region3: #{tpu_custom_call.1} parent=1 // pred_check_branch
      %17 = sbr.rel (0) target = $region5
    $region4: #{tpu_custom_call.1} parent=1 // pred_region
      %s19 = ssub.s32 128, 128
      %20 = vsyncadd [#allocation4], %s19
      %s22 = sshll.u32 [#allocation3], 4
      %s23 = int_to_ptr.vmem [resolvable:$true] %s22
      %25 = dma.hbm_to_vmem [thread:$0]  %s0, 128, %s23, [#allocation4]
    $region5: #{tpu_custom_call.1} parent=1 // pred_fallthru
      _
    // Predicated region
    $region6: #{tpu_custom_call.1} parent=1 // pred_check
      _
    $region7: #{tpu_custom_call.1} parent=1 // pred_check_branch
      %27 = sbr.rel (0) target = $region9
    $region8: #{tpu_custom_call.1} parent=1 // pred_region
      %s29 = ssub.s32 128, 128
      %30 = vsyncadd [#allocation6], %s29
      %s31 = sshll.u32 [#allocation5], 4
      %s32 = int_to_ptr.vmem [resolvable:$true] %s31
      %37 = dma.hbm_to_vmem [thread:$0]  %s1, 128, %s32, [#allocation6], 64, 64, 4
    $region9: #{tpu_custom_call.1} parent=1 // pred_fallthru
      _
    // Predicated region
    $region10: #{tpu_custom_call.1} parent=1 // pred_check
      _
    $region11: #{tpu_custom_call.1} parent=1 // pred_check_branch
      %39 = sbr.rel (0) target = $region13
    $region12: #{tpu_custom_call.1} parent=1 // pred_region
      _
    $region13: #{tpu_custom_call.1} parent=1 // pred_fallthru
      _
    // Predicated region
    $region14: #{tpu_custom_call.1} parent=1 // pred_check
      _
    $region15: #{tpu_custom_call.1} parent=1 // pred_check_branch
      %41 = sbr.rel (0) target = $region17
    $region16: #{tpu_custom_call.1} parent=1 // pred_region
      %s43 = ssub.s32 1024, 1024
      %44 = vsyncadd [#allocation6], %s43
      %s45 = sshll.u32 [#allocation7], 4
      %s46 = int_to_ptr.vmem [resolvable:$true] %s45
      %51 = dma.hbm_to_vmem [thread:$0]  %s3, 1024, %s46, [#allocation6], 64, 64, 4
    $region17: #{tpu_custom_call.1} parent=1 // pred_fallthru
      _
    // Predicated region
    $region18: #{tpu_custom_call.1} parent=1 // pred_check
      _
    $region19: #{tpu_custom_call.1} parent=1 // pred_check_branch
      %53 = sbr.rel (0) target = $region21
    $region20: #{tpu_custom_call.1} parent=1 // pred_region
      _
    $region21: #{tpu_custom_call.1} parent=1 // pred_fallthru
      _
    // Predicated region
    $region22: #{tpu_custom_call.1} parent=1 // pred_check
      _
    $region23: #{tpu_custom_call.1} parent=1 // pred_check_branch
      %55 = sbr.rel (0) target = $region25
    $region24: #{tpu_custom_call.1} parent=1 // pred_region
      _
    $region25: #{tpu_custom_call.1} parent=1 // pred_fallthru
      _
    // Predicated region
    $region26: #{tpu_custom_call.1} parent=1 // pred_check
      _
    $region27: #{tpu_custom_call.1} parent=1 // pred_check_branch
      %57 = sbr.rel (0) target = $region29
    $region28: #{tpu_custom_call.1} parent=1 // pred_region
      _
    $region29: #{tpu_custom_call.1} parent=1 // pred_fallthru
      _
    // Predicated region
    $region30: #{tpu_custom_call.1} parent=1 // pred_check
      _
    $region31: #{tpu_custom_call.1} parent=1 // pred_check_branch
      %59 = sbr.rel (0) target = $region33
    $region32: #{tpu_custom_call.1} parent=1 // pred_region
      %60 = dma.done [#allocation4], 128
    $region33: #{tpu_custom_call.1} parent=1 // pred_fallthru
      _
    // Predicated region
    $region34: #{tpu_custom_call.1} parent=1 // pred_check
      _
    $region35: #{tpu_custom_call.1} parent=1 // pred_check_branch
      %62 = sbr.rel (0) target = $region37
    $region36: #{tpu_custom_call.1} parent=1 // pred_region
      %63 = dma.done [#allocation6], 128
    $region37: #{tpu_custom_call.1} parent=1 // pred_fallthru
      _
    // Predicated region
    $region38: #{tpu_custom_call.1} parent=1 // pred_check
      _
    $region39: #{tpu_custom_call.1} parent=1 // pred_check_branch
      %65 = sbr.rel (0) target = $region41
    $region40: #{tpu_custom_call.1} parent=1 // pred_region
      %66 = dma.done [#allocation6], 1024
    $region41: #{tpu_custom_call.1} parent=1 // pred_fallthru
      _
    %v68 = vld [vmem:[#allocation3] sm:$0xff]
    %v69 = vpack.c.bf16 %v68, %v68
    %v70 = vld [vmem:[#allocation5] sm:$0xf]
    %v71 = vld [vmem:[#allocation5 + $0x4] sm:$0x1]
    %v72 = vld [vmem:[%s2] sm:$0x1]
    %v74 = vlaneseq
    %v75 = vshrl.u32 %v74, 7
    %v76 = vsub.s32 0, %v75
    %v77 = vrot.slane %v72, %v76
    %v81 = vunpack.c.l.b16 %v70
    %v82 = vunpack.c.l.b16 %v71
    %v83 = vpack.c.b16 %v82, %v81
    %vm84 = vcmask 80896
    %v86 = vsel %vm84, %v69, 0
    %vm88 = vcmask 1044480
    %v90 = vsel %vm88, %v83, 0
    %92 = vmatprep.subr.bf16.mxu0 0
    %93 = vmatpush1.bf16.msra.mxu0 %v90
    %94 = vmatprep.subr.bf16.mxu0 0
    %95 = vmatpush1.bf16.msra.mxu0 0
    %96 = vmatprep.subr.bf16.mxu0 0
    %97 = vmatpush1.bf16.msra.mxu0 0
    %98 = vmatprep.subr.bf16.mxu0 0
    %99 = vmatpush1.bf16.msra.mxu0 0
    %100 = vmatprep.subr.bf16.mxu0 0
    %101 = vmatpush1.bf16.msra.mxu0 0
    %102 = vmatprep.subr.bf16.mxu0 0
    %103 = vmatpush1.bf16.msra.mxu0 0
    %104 = vmatprep.subr.bf16.mxu0 0
    %105 = vmatpush1.bf16.msra.mxu0 0
    %106 = vmatprep.subr.bf16.mxu0 0
    %107 = vmatpush1.bf16.msra.mxu0 0
    %108 = vmatprep.subr.bf16.mxu0 0
    %109 = vmatpush1.bf16.msra.mxu0 0
    %110 = vmatprep.subr.bf16.mxu0 0
    %111 = vmatpush1.bf16.msra.mxu0 0
    %112 = vmatprep.subr.bf16.mxu0 0
    %113 = vmatpush1.bf16.msra.mxu0 0
    %114 = vmatprep.subr.bf16.mxu0 0
    %115 = vmatpush1.bf16.msra.mxu0 0
    %116 = vmatprep.subr.bf16.mxu0 0
    %117 = vmatpush1.bf16.msra.mxu0 0
    %118 = vmatprep.subr.bf16.mxu0 0
    %119 = vmatpush1.bf16.msra.mxu0 0
    %120 = vmatprep.subr.bf16.mxu0 0
    %121 = vmatpush1.bf16.msra.mxu0 0
    %122 = vmatprep.subr.bf16.mxu0 0
    %123 = vmatpush1.bf16.msra.mxu0 0
    %124 = vmatprep.mubr.bf16.mxu0 0
    %125 = vmatmul.mubr.bf16.gmra.mrb[0].mxu0 %v86
    %v126 = vpop.f32.mrb[0].mxu0
    %v127 = vadd.f32 %v77, %v126
    %v128 = vpop.f32.mrb[0].mxu0
    %v129 = vpop.f32.mrb[0].mxu0
    %v130 = vpop.f32.mrb[0].mxu0
    %131 = vdwg.mxu0
    %v132 = vmax.f32 %v127, 0.0
    %v133 = vpack.c.bf16 %v132, %v132
    %v134 = vld [vmem:[#allocation7] sm:$0xf]
    %v135 = vld [vmem:[#allocation7 + $0x4] sm:$0xf]
    %v136 = vld [vmem:[#allocation7 + $0x8] sm:$0xf]
    %v137 = vld [vmem:[#allocation7 + $0xc] sm:$0xf]
    %v138 = vld [vmem:[#allocation7 + $0x10] sm:$0xf]
    %v139 = vld [vmem:[#allocation7 + $0x14] sm:$0xf]
    %v140 = vld [vmem:[#allocation7 + $0x18] sm:$0xf]
    %v141 = vld [vmem:[#allocation7 + $0x1c] sm:$0xf]
    %v142 = vld [vmem:[#allocation7 + $0x20] sm:$0xf]
    %v143 = vld [vmem:[#allocation7 + $0x24] sm:$0xf]
    %v144 = vld [vmem:[#allocation7 + $0x28] sm:$0xf]
    %v145 = vld [vmem:[#allocation7 + $0x2c] sm:$0xf]
    %v146 = vld [vmem:[#allocation7 + $0x30] sm:$0xf]
    %v147 = vld [vmem:[#allocation7 + $0x34] sm:$0xf]
    %v148 = vld [vmem:[#allocation7 + $0x38] sm:$0xf]
    %v149 = vld [vmem:[#allocation7 + $0x3c] sm:$0xf]
    %v150 = vld [vmem:[%s4] sm:$0x1]
    %v152 = vlaneseq
    %v153 = vshrl.u32 %v152, 7
    %v154 = vsub.s32 0, %v153
    %v155 = vrot.slane %v150, %v154
    %v173 = vunpack.c.l.b16 %v134
    %v174 = vunpack.c.l.b16 %v135
    %v175 = vunpack.c.l.b16 %v136
    %v176 = vunpack.c.l.b16 %v137
    %v177 = vunpack.c.l.b16 %v138
    %v178 = vunpack.c.l.b16 %v139
    %v179 = vunpack.c.l.b16 %v140
    %v180 = vunpack.c.l.b16 %v141
    %v181 = vunpack.c.l.b16 %v142
    %v182 = vunpack.c.l.b16 %v143
    %v183 = vunpack.c.l.b16 %v144
    %v184 = vunpack.c.l.b16 %v145
    %v185 = vunpack.c.l.b16 %v146
    %v186 = vunpack.c.l.b16 %v147
    %v187 = vunpack.c.l.b16 %v148
    %v188 = vunpack.c.l.b16 %v149
    %v189 = vpack.c.b16 %v174, %v173
    %v190 = vpack.c.b16 %v176, %v175
    %v191 = vpack.c.b16 %v178, %v177
    %v192 = vpack.c.b16 %v180, %v179
    %v193 = vpack.c.b16 %v182, %v181
    %v194 = vpack.c.b16 %v184, %v183
    %v195 = vpack.c.b16 %v186, %v185
    %v196 = vpack.c.b16 %v188, %v187
    %205 = vmatprep.subr.bf16.mxu0 0
    %206 = vmatpush1.bf16.msra.mxu0 %v189
    %207 = vmatprep.subr.bf16.mxu0 0
    %208 = vmatpush1.bf16.msra.mxu0 %v190
    %209 = vmatprep.subr.bf16.mxu0 0
    %210 = vmatpush1.bf16.msra.mxu0 %v191
    %211 = vmatprep.subr.bf16.mxu0 0
    %212 = vmatpush1.bf16.msra.mxu0 %v192
    %213 = vmatprep.subr.bf16.mxu0 0
    %214 = vmatpush1.bf16.msra.mxu0 %v193
    %215 = vmatprep.subr.bf16.mxu0 0
    %216 = vmatpush1.bf16.msra.mxu0 %v194
    %217 = vmatprep.subr.bf16.mxu0 0
    %218 = vmatpush1.bf16.msra.mxu0 %v195
    %219 = vmatprep.subr.bf16.mxu0 0
    %220 = vmatpush1.bf16.msra.mxu0 %v196
    %221 = vmatprep.subr.bf16.mxu0 0
    %222 = vmatpush1.bf16.msra.mxu0 0
    %223 = vmatprep.subr.bf16.mxu0 0
    %224 = vmatpush1.bf16.msra.mxu0 0
    %225 = vmatprep.subr.bf16.mxu0 0
    %226 = vmatpush1.bf16.msra.mxu0 0
    %227 = vmatprep.subr.bf16.mxu0 0
    %228 = vmatpush1.bf16.msra.mxu0 0
    %229 = vmatprep.subr.bf16.mxu0 0
    %230 = vmatpush1.bf16.msra.mxu0 0
    %231 = vmatprep.subr.bf16.mxu0 0
    %232 = vmatpush1.bf16.msra.mxu0 0
    %233 = vmatprep.subr.bf16.mxu0 0
    %234 = vmatpush1.bf16.msra.mxu0 0
    %235 = vmatprep.subr.bf16.mxu0 0
    %236 = vmatpush1.bf16.msra.mxu0 0
    %237 = vmatprep.mubr.bf16.mxu0 0
    %238 = vmatmul.mubr.bf16.gmra.mrb[0].mxu0 %v133
    %v239 = vpop.f32.mrb[0].mxu0
    %v240 = vadd.f32 %v155, %v239
    %v241 = vpop.f32.mrb[0].mxu0
    %v242 = vpop.f32.mrb[0].mxu0
    %v243 = vpop.f32.mrb[0].mxu0
    %244 = vdwg.mxu0
    %v245 = vmax.f32 %v240, 0.0
    %v246 = vld [vmem:[%s5] sm:$0x1]
    %v248 = vlaneseq
    %v249 = vshrl.u32 %v248, 7
    %v250 = vsub.s32 0, %v249
    %v251 = vrot.slane %v246, %v250
    %v253 = vmul.f32 %v245, %v251
    %254 = vadd.xlane.f32.xlu0 %v253
    %v255 = vpop.xlane.xlu0 %254
    %v256 = vld [vmem:[#allocation2] sm:$0x1]
    %v258 = vlaneseq
    %v259 = vshrl.u32 %v258, 7
    %v260 = vsub.s32 0, %v259
    %v261 = vrot.slane %v256, %v260
    %v263 = vadd.f32 %v255, %v261
    %vm264 = vcmask 7168
    %265 = vst.msk [vmem:[%s7] sm:$0xff] %vm264, %v263
    // Predicated region
    $region42: #{tpu_custom_call.1} parent=1 // pred_check
      _
    $region43: #{tpu_custom_call.1} parent=1 // pred_check_branch
      %267 = sbr.rel (0) target = $region45
    $region44: #{tpu_custom_call.1} parent=1 // pred_region
      _
    $region45: #{tpu_custom_call.1} parent=1 // pred_fallthru
      _
    // Predicated region
    $region46: #{tpu_custom_call.1} parent=1 // pred_check
      _
    $region47: #{tpu_custom_call.1} parent=1 // pred_check_branch
      %269 = sbr.rel (0) target = $region49
    $region48: #{tpu_custom_call.1} parent=1 // pred_region
      _
    $region49: #{tpu_custom_call.1} parent=1 // pred_fallthru
      _
    %270 = vsyncpa [#allocation4], 1
    %271 = vsyncpa [#allocation6], 1

</llo_original>
